<compile_context>
chip_gen: v7x
topology: tpu7x:2x2x1
jax: 0.10.0
libtpu: 0.0.40
codegen_flags: <defaults>
</compile_context>

<pallas_src>
import numpy as np
import jax
import jax.numpy as jnp
from jax.experimental import pallas as pl
from jax.experimental.pallas import tpu as pltpu


def _round_up(x, m):
    return -(-x // m) * m


def _pick_batch_tile(batch, d, itemsize):
    """Choose (tile, padded_batch) for the 1-D batch grid.

    * tile is a multiple of 16 sublanes (legal for f32 and bf16 tables).
    * Large batches use up to 2048-row tiles, bounded so that
      2 inputs x 2 pipeline buffers x tile*d*itemsize <= ~12 MiB (fits even
      v5e's 16 MiB scoped-VMEM default; big headroom on v6e/v7x's 32 MiB).
    * Batches spanning more than one tile are also capped at b_pad/2 so the
      "parallel" grid axis has >= 2 steps for v7x's two TensorCores.
    """
    small = _round_up(max(batch, 16), 16)
    if small <= 256:
        return small, small                       # single block, single step

    per_block_budget = 3 * 1024 * 1024            # bytes per (tile, d) input
    tile = min(2048, per_block_budget // (d * itemsize))
    tile = max(128, (tile // 128) * 128)

    b_pad = _round_up(batch, 128)
    if 2 * tile > b_pad:                          # guarantee >= 2 grid steps
        tile = max(128, ((b_pad // 2) // 128) * 128)
    return tile, _round_up(batch, tile)


# ---------------------------------------------------------------------------
# Pallas kernel: one batch tile.
#   u_ref  : (TB, D)  user embeddings (native table dtype)
#   v_ref  : (TB, D)  item embeddings (native table dtype)
#   w_ref  : (D, 1)   pre-constrained FC weight column, f32 (VMEM-resident)
#   out_ref: (TB, 3)  col 0: inferences, col 1: sum_d u^2, col 2: sum_d v^2
# ---------------------------------------------------------------------------
def _altgrad_kernel(u_ref, v_ref, w_ref, out_ref):
    u = u_ref[...].astype(jnp.float32)            # upcast in-kernel (bf16 ok)
    v = v_ref[...].astype(jnp.float32)
    w = w_ref[...]                                # (D, 1), already constrained

    z = u * v                                                     # VPU
    scores = jnp.dot(z, w, preferred_element_type=jnp.float32)    # (TB,1) MXU
    su = jnp.sum(u * u, axis=1, keepdims=True)                    # (TB,1) XLU
    sv = jnp.sum(v * v, axis=1, keepdims=True)                    # (TB,1) XLU

    out_ref[...] = jnp.concatenate([scores, su, sv], axis=1)      # one store


# ---------------------------------------------------------------------------
# Wrapper: embedding gather (data-dependent, plain-JAX glue), batch padding,
# weight constrain hoist, pallas_call, tiny scalar finalize for regs.
# ---------------------------------------------------------------------------
def altgrad_forward(users, items, user_table, item_table, fc_weight, reg):
    batch = users.shape[0]
    d = user_table.shape[1]
    itemsize = jnp.dtype(user_table.dtype).itemsize

    # Embedding lookup (data-dependent gather; left to XLA — see TODO above).
    u = user_table[users]                          # (B, D), native dtype
    v = item_table[items]                          # (B, D)

    tile, b_pad = _pick_batch_tile(batch, d, itemsize)
    pad = b_pad - batch
    if pad:
        u = jnp.pad(u, ((0, pad), (0, 0)))         # padded rows are zero
        v = jnp.pad(v, ((0, pad), (0, 0)))

    # constrain(): one-time O(D) op, hoisted out of the per-tile kernel body.
    w = jnp.asarray(fc_weight, jnp.float32).reshape(1, d)
    w_c = (w / jnp.maximum(jnp.sqrt(jnp.sum(w * w)), 1.0)).reshape(d, 1)

    out = pl.pallas_call(
        _altgrad_kernel,
        out_shape=jax.ShapeDtypeStruct((b_pad, 3), jnp.float32),
        grid=(b_pad // tile,),
        in_specs=[
            pl.BlockSpec((tile, d), lambda i: (i, 0)),
            pl.BlockSpec((tile, d), lambda i: (i, 0)),
            pl.BlockSpec((d, 1), lambda i: (0, 0)),   # weight stays resident
        ],
        out_specs=pl.BlockSpec((tile, 3), lambda i: (i, 0)),
        compiler_params=pltpu.CompilerParams(
            dimension_semantics=("parallel",)),
    )(u, v, w_c)

    inferences = out[:batch, 0:1]                     # (B, 1)
    regs = jnp.asarray(reg, jnp.float32) * (
        jnp.sqrt(jnp.sum(out[:batch, 1])) + jnp.sqrt(jnp.sum(out[:batch, 2])))
    return inferences, regs


# ---------------------------------------------------------------------------
# Pure-JAX reference (mirrors the PyTorch module exactly).
# ---------------------------------------------------------------------------
def altgrad_reference(users, items, user_table, item_table, fc_weight, reg):
    w_c = fc_weight / jnp.maximum(jnp.linalg.norm(fc_weight), 1.0)
    u = user_table[users]
    v = item_table[items]
    inferences = (u * v) @ w_c.T
    regs = reg * (jnp.linalg.norm(u) + jnp.linalg.norm(v))
    return inferences, regs


if __name__ == "__main__":
    # AltGrad(num_users=8, num_items=8, embedding_dim=32, reg=0.01), batch B=2.
    num_users, num_items, emb_dim, reg = 8, 8, 32, 0.01
    batch = 2

    key = jax.random.PRNGKey(0)
    k1, k2, k3 = jax.random.split(key, 3)
    user_table = jax.random.normal(k1, (num_users, emb_dim), jnp.float32)
    item_table = jax.random.normal(k2, (num_items, emb_dim), jnp.float32)
    fc_weight = jax.random.normal(k3, (1, emb_dim), jnp.float32)  # Linear(D,1,no bias)

    users = jnp.array([1, 5], dtype=jnp.int32)
    items = jnp.array([2, 7], dtype=jnp.int32)

    fwd = jax.jit(altgrad_forward)
    inferences, regs = fwd(users, items, user_table, item_table, fc_weight,
                           jnp.float32(reg))
    jax.block_until_ready(inferences)
    jax.block_until_ready(regs)

    ref_inf, ref_regs = altgrad_reference(users, items, user_table, item_table,
                                          fc_weight, reg)
    np.testing.assert_allclose(np.asarray(inferences), np.asarray(ref_inf),
                               rtol=1e-4, atol=1e-5)
    np.testing.assert_allclose(np.asarray(regs), np.asarray(ref_regs),
                               rtol=1e-4, atol=1e-5)

    print("KERNEL_OK")
</pallas_src>

<mosaic_0001>
module attributes {stable_mosaic.version = 11 : i64} {
  func.func @_altgrad_kernel(%arg0: i32, %arg1: memref<16x32xf32, #tpu.memory_space<vmem>>, %arg2: memref<16x32xf32, #tpu.memory_space<vmem>>, %arg3: memref<32x1xf32, #tpu.memory_space<vmem>>, %arg4: memref<16x3xf32, #tpu.memory_space<vmem>>) attributes {dimension_semantics = [#tpu.dimension_semantics<parallel>], iteration_bounds = array<i64: 1>, scalar_prefetch = 0 : i64, scratch_operands = 0 : i64, tpu.core_type = #tpu.core_type<tc>, window_params = [{transform_indices = @transform_0, window_bounds = array<i64: 16, 32>}, {transform_indices = @transform_1, window_bounds = array<i64: 16, 32>}, {pipeline_mode = #tpu.pipeline_mode<synchronous>, transform_indices = @transform_2, window_bounds = array<i64: 32, 1>}, {transform_indices = @transform_3, window_bounds = array<i64: 16, 3>}]} {
    %c0 = arith.constant 0 : index
    %c0_0 = arith.constant 0 : index
    %0 = vector.load %arg1[%c0, %c0_0] : memref<16x32xf32, #tpu.memory_space<vmem>>, vector<16x32xf32>
    %c0_1 = arith.constant 0 : index
    %c0_2 = arith.constant 0 : index
    %1 = vector.load %arg2[%c0_1, %c0_2] : memref<16x32xf32, #tpu.memory_space<vmem>>, vector<16x32xf32>
    %c0_3 = arith.constant 0 : index
    %c0_4 = arith.constant 0 : index
    %2 = vector.load %arg3[%c0_3, %c0_4] : memref<32x1xf32, #tpu.memory_space<vmem>>, vector<32x1xf32>
    %3 = arith.mulf %0, %1 : vector<16x32xf32>
    %cst = arith.constant dense<0.000000e+00> : vector<16x1xf32>
    %4 = tpu.matmul %3, %2, %cst {dimension_numbers = #tpu.dot_dimension_numbers<[1], [0], [0], [1], [0, 0, 1, 1], [], []>} : vector<16x32xf32>, vector<32x1xf32>, vector<16x1xf32> -> vector<16x1xf32>
    %5 = arith.mulf %0, %0 : vector<16x32xf32>
    %cst_5 = arith.constant dense<0.000000e+00> : vector<16xf32>
    %6 = vector.multi_reduction <add>, %5, %cst_5 [1] : vector<16x32xf32> to vector<16xf32>
    %7 = vector.shape_cast %6 : vector<16xf32> to vector<16x1xf32>
    %8 = arith.mulf %1, %1 : vector<16x32xf32>
    %cst_6 = arith.constant dense<0.000000e+00> : vector<16xf32>
    %9 = vector.multi_reduction <add>, %8, %cst_6 [1] : vector<16x32xf32> to vector<16xf32>
    %10 = vector.shape_cast %9 : vector<16xf32> to vector<16x1xf32>
    %11 = tpu.concatenate %4, %7, %10 in 1 : vector<16x1xf32>, vector<16x1xf32>, vector<16x1xf32> -> vector<16x3xf32>
    %c0_7 = arith.constant 0 : index
    %c0_8 = arith.constant 0 : index
    %12 = vector.load %arg4[%c0_7, %c0_8] : memref<16x3xf32, #tpu.memory_space<vmem>>, vector<16x3xf32>
    tpu.vector_store %arg4[%c0_7, %c0_8], %11 {strides = array<i32>} : memref<16x3xf32, #tpu.memory_space<vmem>>, vector<16x3xf32>,
    return
  }
  func.func @transform_0(%arg0: i32) -> (i32, i32) {
    %c0_i32 = arith.constant 0 : i32
    %c0_i32_0 = arith.constant 0 : i32
    return %arg0, %c0_i32 : i32, i32
  }
  func.func @transform_1(%arg0: i32) -> (i32, i32) {
    %c0_i32 = arith.constant 0 : i32
    %c0_i32_0 = arith.constant 0 : i32
    return %arg0, %c0_i32 : i32, i32
  }
  func.func @transform_2(%arg0: i32) -> (i32, i32) {
    %c0_i32 = arith.constant 0 : i32
    %c0_i32_0 = arith.constant 0 : i32
    %c0_i32_1 = arith.constant 0 : i32
    return %c0_i32, %c0_i32_0 : i32, i32
  }
  func.func @transform_3(%arg0: i32) -> (i32, i32) {
    %c0_i32 = arith.constant 0 : i32
    %c0_i32_0 = arith.constant 0 : i32
    return %arg0, %c0_i32 : i32, i32
  }
}

</mosaic_0001>

<llo_original>
// kernel: altgrad_forward.1
$region0: #{altgrad_forward.1}
  #allocation0 [shape = 'u32[]', space=smem, size = 0x4, offset = 0x4, fixed_abs, tag = 'smem constant byte address 0x4 - core index']
  #allocation1 [shape = 'u32[144,128]{1,0:T(1,128)}', space=vmem, size = 0x12000, scoped, tag = 'internal scratch']
  %s0 = inlined_call_operand.vmem [shape: f32[16,32], index: 0, kind: input, shape index: {}]
  %s1 = inlined_call_operand.vmem [shape: f32[16,32], index: 1, kind: input, shape index: {}]
  %s2 = inlined_call_operand.vmem [shape: f32[32,1], index: 2, kind: input, shape index: {}]
  %s3 = inlined_call_operand.vmem [shape: f32[16,3], index: 3, kind: output, shape index: {}]
  %s4 = sld [smem:[#allocation0]]
  $region22: #{altgrad_forward.1} parent=0
    _
  %s6 = ssub.s32 1, %s4
  %s7 = scalar_select 0, %s6, %s4
  // Predicated region
  $region2: #{altgrad_forward.1} parent=0 // pred_check
    _
  $region3: #{altgrad_forward.1} parent=0 // pred_check_branch
    %9 = sbr.rel (0) target = $region5
  $region4: #{altgrad_forward.1} parent=0 // pred_region
    _
  $region5: #{altgrad_forward.1} parent=0 // pred_fallthru
    _
  // Predicated region
  $region6: #{altgrad_forward.1} parent=0 // pred_check
    _
  $region7: #{altgrad_forward.1} parent=0 // pred_check_branch
    %11 = sbr.rel (0) target = $region9
  $region8: #{altgrad_forward.1} parent=0 // pred_region
    _
  $region9: #{altgrad_forward.1} parent=0 // pred_fallthru
    _
  // Predicated region
  $region10: #{altgrad_forward.1} parent=0 // pred_check
    _
  $region11: #{altgrad_forward.1} parent=0 // pred_check_branch
    %13 = sbr.rel (0) target = $region13
  $region12: #{altgrad_forward.1} parent=0 // pred_region
    _
  $region13: #{altgrad_forward.1} parent=0 // pred_fallthru
    _
  %v14 = vld [vmem:[%s0] sm:$0xff]
  %v15 = vld [vmem:[%s0 + $0x8] sm:$0xff]
  %v16 = vld [vmem:[%s1] sm:$0xff]
  %v17 = vld [vmem:[%s1 + $0x8] sm:$0xff]
  %v18 = vld [vmem:[%s2] sm:$0xff]
  %v19 = vld [vmem:[%s2 + $0x8] sm:$0xff]
  %v20 = vld [vmem:[%s2 + $0x10] sm:$0xff]
  %v21 = vld [vmem:[%s2 + $0x18] sm:$0xff]
  %v22 = vmul.f32 %v14, %v16
  %v23 = vmul.f32 %v15, %v17
  %vm24 = vcmask 261120
  %v26 = vsel %vm24, %v22, 0
  %v29 = vsel %vm24, %v23, 0
  %31 = vmatprep.subr.mxu0 0.0
  %32 = vmatpush1.msra.mxu0 %v18
  %33 = vmatprep.subr.mxu0 0.0
  %34 = vmatpush1.msra.mxu0 %v19
  %35 = vmatprep.subr.mxu0 0.0
  %36 = vmatpush1.msra.mxu0 %v20
  %37 = vmatprep.subr.mxu0 0.0
  %38 = vmatpush1.msra.mxu0 %v21
  %39 = vmatprep.subr.mxu0 0.0
  %40 = vmatpush1.msra.mxu0 0.0
  %41 = vmatprep.subr.mxu0 0.0
  %42 = vmatpush1.msra.mxu0 0.0
  %43 = vmatprep.subr.mxu0 0.0
  %44 = vmatpush1.msra.mxu0 0.0
  %45 = vmatprep.subr.mxu0 0.0
  %46 = vmatpush1.msra.mxu0 0.0
  %47 = vmatprep.subr.mxu0 0.0
  %48 = vmatpush1.msra.mxu0 0.0
  %49 = vmatprep.subr.mxu0 0.0
  %50 = vmatpush1.msra.mxu0 0.0
  %51 = vmatprep.subr.mxu0 0.0
  %52 = vmatpush1.msra.mxu0 0.0
  %53 = vmatprep.subr.mxu0 0.0
  %54 = vmatpush1.msra.mxu0 0.0
  %55 = vmatprep.subr.mxu0 0.0
  %56 = vmatpush1.msra.mxu0 0.0
  %57 = vmatprep.subr.mxu0 0.0
  %58 = vmatpush1.msra.mxu0 0.0
  %59 = vmatprep.subr.mxu0 0.0
  %60 = vmatpush1.msra.mxu0 0.0
  %61 = vmatprep.subr.mxu0 0.0
  %62 = vmatpush1.msra.mxu0 0.0
  %63 = vmatprep.subr.mxu0 0.0
  %64 = vmatpush1.msra.mxu0 0.0
  %65 = vmatprep.subr.mxu0 0.0
  %66 = vmatpush1.msra.mxu0 0.0
  %67 = vmatprep.subr.mxu0 0.0
  %68 = vmatpush1.msra.mxu0 0.0
  %69 = vmatprep.subr.mxu0 0.0
  %70 = vmatpush1.msra.mxu0 0.0
  %71 = vmatprep.subr.mxu0 0.0
  %72 = vmatpush1.msra.mxu0 0.0
  %73 = vmatprep.subr.mxu0 0.0
  %74 = vmatpush1.msra.mxu0 0.0
  %75 = vmatprep.subr.mxu0 0.0
  %76 = vmatpush1.msra.mxu0 0.0
  %77 = vmatprep.subr.mxu0 0.0
  %78 = vmatpush1.msra.mxu0 0.0
  %79 = vmatprep.subr.mxu0 0.0
  %80 = vmatpush1.msra.mxu0 0.0
  %81 = vmatprep.subr.mxu0 0.0
  %82 = vmatpush1.msra.mxu0 0.0
  %83 = vmatprep.subr.mxu0 0.0
  %84 = vmatpush1.msra.mxu0 0.0
  %85 = vmatprep.subr.mxu0 0.0
  %86 = vmatpush1.msra.mxu0 0.0
  %87 = vmatprep.subr.mxu0 0.0
  %88 = vmatpush1.msra.mxu0 0.0
  %89 = vmatprep.subr.mxu0 0.0
  %90 = vmatpush1.msra.mxu0 0.0
  %91 = vmatprep.subr.mxu0 0.0
  %92 = vmatpush1.msra.mxu0 0.0
  %93 = vmatprep.subr.mxu0 0.0
  %94 = vmatpush1.msra.mxu0 0.0
  %95 = vmatprep.mubr.f32.mxu0 0.0
  %96 = vmatmul.mubr.f32.gmra.mrb[0].mxu0 %v26
  %v97 = vpop.f32.mrb[0].mxu0
  %v98 = vadd.f32 0.0, %v97
  %v99 = vpop.f32.mrb[0].mxu0
  %100 = vmatprep.mubr.f32.mxu0 0.0
  %101 = vmatmul.mubr.f32.gmra.mrb[0].mxu0 %v29
  %v102 = vpop.f32.mrb[0].mxu0
  %v103 = vadd.f32 0.0, %v102
  %v104 = vpop.f32.mrb[0].mxu0
  %105 = vdwg.mxu0
  %v106 = vmul.f32 %v14, %v14
  %v107 = vmul.f32 %v15, %v15
  %v108 = vsel %vm24, %v106, 0.0
  %109 = vadd.xlane.f32.xlu0 %v108
  %v110 = vpop.xlane.xlu0 %109
  %v111 = vsel %vm24, %v107, 0.0
  %112 = vadd.xlane.f32.xlu0 %v111
  %v113 = vpop.xlane.xlu0 %112
  %v114 = vmul.f32 %v16, %v16
  %v115 = vmul.f32 %v17, %v17
  %v116 = vsel %vm24, %v114, 0.0
  %117 = vadd.xlane.f32.xlu0 %v116
  %v118 = vpop.xlane.xlu0 %117
  %v119 = vsel %vm24, %v115, 0.0
  %120 = vadd.xlane.f32.xlu0 %v119
  %v121 = vpop.xlane.xlu0 %120
  %vm122 = vcmask 7168
  %v123 = vsel %vm122, %v98, %v110
  %v124 = vsel %vm122, %v103, %v113
  %vm125 = vcmask 15360
  %v126 = vsel %vm125, %v123, %v118
  %v127 = vsel %vm125, %v124, %v121
  %vm128 = vcmask 23552
  %129 = vst.msk [vmem:[%s3] sm:$0xff] %vm128, %v126
  %130 = vst.msk [vmem:[%s3 + $0x8] sm:$0xff] %vm128, %v127
  // Predicated region
  $region14: #{altgrad_forward.1} parent=0 // pred_check
    _
  $region15: #{altgrad_forward.1} parent=0 // pred_check_branch
    %132 = sbr.rel (0) target = $region17
  $region16: #{altgrad_forward.1} parent=0 // pred_region
    _
  $region17: #{altgrad_forward.1} parent=0 // pred_fallthru
    _
  // Predicated region
  $region18: #{altgrad_forward.1} parent=0 // pred_check
    _
  $region19: #{altgrad_forward.1} parent=0 // pred_check_branch
    %134 = sbr.rel (0) target = $region21
  $region20: #{altgrad_forward.1} parent=0 // pred_region
    _
  $region21: #{altgrad_forward.1} parent=0 // pred_fallthru
    _

</llo_original>
